<compile_context>
chip_gen: v7x
topology: tpu7x:2x2x1
jax: 0.10.0
libtpu: 0.0.40
codegen_flags: <defaults>
</compile_context>

<pallas_src>
import jax
import jax.numpy as jnp
from jax import lax
from jax.experimental import pallas as pl
from jax.experimental.pallas import tpu as pltpu

_LANES = 128


def _round_up(x, m):
    return -(-x // m) * m


def _choose_split(batch, feats, pack):
    """Smallest S with S | feats and (batch*S) % pack == 0 (full sublane pack)."""
    for s in range(1, min(feats, 8 * pack) + 1):
        if feats % s == 0 and (batch * s) % pack == 0:
            return s
    # Fallback: best-effort divisor of feats (partial sublane fill, still correct).
    for s in range(min(feats, pack), 0, -1):
        if feats % s == 0:
            return s
    return 1


def _make_kernel(*, R, tn, inner, out_lanes, steps, m_true, full_cover,
                 unroll, carry_in_vregs):
    n_iter = tn // inner
    n_sub = inner // out_lanes

    def kernel(y_ref, b_ref, sb_ref, sy_ref, sy2_ref):
        c = pl.program_id(0)
        i = pl.program_id(1)

        @pl.when(i == 0)
        def _():
            sb_ref[...] = jnp.zeros_like(sb_ref)
            sy_ref[...] = jnp.zeros_like(sy_ref)
            sy2_ref[...] = jnp.zeros_like(sy2_ref)

        blk = c * steps + i          # un-clamped global column-block index
        col0 = blk * tn              # first column this step nominally covers

        def accumulate(masked):
            if masked:
                # Hoisted out of the chunk loop: per-chunk column offsets.
                lane_idx = lax.broadcasted_iota(jnp.int32, (R, inner), 1)

            def chunk(j):
                off = pl.multiple_of(j * inner, inner)
                y = y_ref[:, pl.ds(off, inner)].astype(jnp.float32)
                b = b_ref[:, pl.ds(off, inner)].astype(jnp.float32)
                if masked:
                    # Columns >= m_true hold unspecified DMA padding; use a
                    # select (not a multiply) so NaN/Inf garbage cannot leak.
                    valid = lane_idx < (m_true - col0 - off)
                    y = jnp.where(valid, y, 0.0)
                    b = jnp.where(valid, b, 0.0)
                yb = y * b
                y2b = y * yb
                # Fold the chunk down to out_lanes lanes with pure VPU adds
                # (static, lane-aligned slices of in-vreg values are cheap).
                db = b[:, :out_lanes]
                dy = yb[:, :out_lanes]
                dy2 = y2b[:, :out_lanes]
                for k in range(1, n_sub):
                    sl = slice(k * out_lanes, (k + 1) * out_lanes)
                    db = db + b[:, sl]
                    dy = dy + yb[:, sl]
                    dy2 = dy2 + y2b[:, sl]
                return db, dy, dy2

            if carry_in_vregs:
                def body(j, carry):
                    sb, sy, sy2 = carry
                    db, dy, dy2 = chunk(j)
                    return sb + db, sy + dy, sy2 + dy2

                z = jnp.zeros((R, out_lanes), jnp.float32)
                sb, sy, sy2 = lax.fori_loop(0, n_iter, body, (z, z, z),
                                            unroll=unroll)
                sb_ref[0] = sb_ref[0] + sb
                sy_ref[0] = sy_ref[0] + sy
                sy2_ref[0] = sy2_ref[0] + sy2
            else:
                # Large row count: partials would not fit in vregs; accumulate
                # straight into the VMEM-resident output block.
                def body(j, carry):
                    db, dy, dy2 = chunk(j)
                    sb_ref[0] = sb_ref[0] + db
                    sy_ref[0] = sy_ref[0] + dy
                    sy2_ref[0] = sy2_ref[0] + dy2
                    return carry

                lax.fori_loop(0, n_iter, body, 0, unroll=unroll)

        if full_cover:
            # Static fast path: every block is fully in bounds.
            accumulate(masked=False)
        else:
            need_mask = (col0 + tn) > m_true

            @pl.when(jnp.logical_not(need_mask))
            def _():
                accumulate(masked=False)

            @pl.when(need_mask)
            def _():
                accumulate(masked=True)

    return kernel


def dive_loss(y_pred, b_pred, *, target_tile_bytes=8 << 20,
              vmem_limit_bytes=48 << 20):
    """y_pred, b_pred: [B, C, H, W] (any float/int dtype) -> scalar f32 loss.

    Defaults are sized for v7x (64 MiB VMEM); on v5e/v6e (128 MiB VMEM) you may
    raise target_tile_bytes to 16<<20 and vmem_limit_bytes to ~80<<20.
    """
    assert y_pred.shape == b_pred.shape
    B = int(y_pred.shape[0])
    N = int(y_pred.size // B)
    itemsize = int(jnp.dtype(y_pred.dtype).itemsize)

    # Dtype-aware sublane packing: 8 rows fill an f32 vreg, 16 bf16, 32 int8.
    pack = max(8, 32 // max(1, min(4, itemsize)))
    S = _choose_split(B, N, pack)
    R = B * S
    M = N // S                               # true columns per row (no padding)
    row_groups = -(-R // 8)

    per_input_bytes = B * N * itemsize
    bytes_per_col = R * itemsize

    if M < _LANES:
        # Tiny problem: one block that exactly matches the array dims.
        nsplit, steps, total_blocks = 1, 1, 1
        tn = M
        inner = M
        out_lanes = M
    else:
        out_lanes = _LANES
        tn_max = (M // _LANES) * _LANES      # keep block starts inside the array
        tn_cap = min(tn_max,
                     max(_LANES,
                         (int(target_tile_bytes) // bytes_per_col)
                         // _LANES * _LANES))
        if per_input_bytes <= (1 << 20):
            nsplit, min_steps = 1, 1         # launch overhead dominates anyway
        else:
            nsplit, min_steps = 2, 4         # 2-way split for v7x's two TCs,
                                             # >=4 steps/split for DMA overlap
        want_blocks = max(nsplit * min_steps, -(-M // tn_cap))
        tn = min(tn_cap, _round_up(-(-M // want_blocks), _LANES))
        total_blocks = -(-M // tn)
        steps = -(-total_blocks // nsplit)
        # Largest lane chunk whose f32 working set stays comfortably in vregs.
        inner = _LANES
        for cand in (1024, 512, 256):
            if tn % cand == 0 and row_groups * (cand // _LANES) <= 8:
                inner = cand
                break

    n_iter = tn // inner
    if n_iter <= 8:
        unroll = n_iter
    elif n_iter % 4 == 0:
        unroll = 4
    elif n_iter % 2 == 0:
        unroll = 2
    else:
        unroll = 1

    full_cover = (tn * total_blocks == M) and (nsplit * steps == total_blocks)
    carry_in_vregs = R <= 64

    # Free reshapes (contiguous, S | N): row r = b*S + s holds features
    # [s*M, (s+1)*M) of sample b.
    y2 = y_pred.reshape(R, M)
    b2 = b_pred.reshape(R, M)

    if nsplit * steps == total_blocks:
        def in_map(c, i):
            return (0, c * steps + i)
    else:
        # Over-covered trailing steps re-read the last real block (never an
        # out-of-range block index); the kernel masks them to zero contribution.
        def in_map(c, i):
            return (0, jnp.minimum(c * steps + i, total_blocks - 1))

    def out_map(c, i):
        return (c, 0, 0)

    in_spec = pl.BlockSpec((R, tn), in_map)
    out_spec = pl.BlockSpec((1, R, out_lanes), out_map)
    part = jax.ShapeDtypeStruct((nsplit, R, out_lanes), jnp.float32)

    kernel = _make_kernel(R=R, tn=tn, inner=inner, out_lanes=out_lanes,
                          steps=steps, m_true=M, full_cover=full_cover,
                          unroll=unroll, carry_in_vregs=carry_in_vregs)

    sb, sy, sy2 = pl.pallas_call(
        kernel,
        out_shape=(part, part, part),
        grid_spec=pltpu.PrefetchScalarGridSpec(
            num_scalar_prefetch=0,
            grid=(nsplit, steps),
            in_specs=[in_spec, in_spec],
            out_specs=[out_spec, out_spec, out_spec],
        ),
        # TODO(synk): on v7x, verify the leading axis really shards across both
        #             TensorCores; if Mosaic serializes it, switch the leading
        #             axis to pltpu.CORE_PARALLEL.
        compiler_params=pltpu.CompilerParams(
            dimension_semantics=("parallel", "arbitrary"),
            vmem_limit_bytes=int(vmem_limit_bytes),
        ),
    )(y2, b2)

    # Tiny epilogue on (nsplit, R, out_lanes) partials: combine splits, lanes
    # and the S per-sample rows, then masked mean/std and batch mean.
    def per_sample(p):
        return p.sum(axis=(0, 2)).reshape(B, S).sum(axis=-1)

    cnt = jnp.maximum(per_sample(sb), 1e-6)      # empty masks -> std 0
    mean = per_sample(sy) / cnt
    # NOTE: single-pass variance; fine for bounded activations (sigmoid).  Use
    # a shifted scheme if y_pred can be large-magnitude raw logits.
    var = per_sample(sy2) / cnt - mean * mean
    std = jnp.sqrt(jnp.maximum(var, 0.0))
    return jnp.mean(std)


def _dive_loss_ref(y_pred, b_pred):
    B = y_pred.shape[0]
    y = y_pred.reshape(B, -1).astype(jnp.float32)
    b = b_pred.reshape(B, -1).astype(jnp.float32)
    cnt = jnp.maximum(jnp.sum(b, axis=-1), 1e-6)
    mean = jnp.sum(b * y, axis=-1) / cnt
    var = jnp.sum(b * y * y, axis=-1) / cnt - mean * mean
    return jnp.mean(jnp.sqrt(jnp.maximum(var, 0.0)))


if __name__ == "__main__":
    key = jax.random.PRNGKey(0)

    def make_inputs(k, shape, dtype):
        k1, k2 = jax.random.split(k)
        # y_pred: soft predictions in [0, 1]; b_pred: weak-label / box mask {0, 1}.
        y = jax.nn.sigmoid(jax.random.normal(k1, shape, dtype=jnp.float32))
        b = (jax.random.uniform(k2, shape) > 0.5).astype(jnp.float32)
        return y.astype(dtype), b.astype(dtype)

    jit_loss = jax.jit(dive_loss)

    cases = [
        ((2, 4, 16, 16), jnp.float32, 1e-5),    # exact tiling (no masking)
        ((2, 4, 18, 18), jnp.float32, 1e-5),    # ragged tail -> in-kernel masking
        ((2, 6, 16, 16), jnp.bfloat16, 1e-4),   # 16-bit sublane packing (16 rows)
    ]
    for shape, dtype, tol in cases:
        key, sub = jax.random.split(key)
        y_pred, b_pred = make_inputs(sub, shape, dtype)
        loss = jax.block_until_ready(jit_loss(y_pred, b_pred))
        ref = jax.block_until_ready(_dive_loss_ref(y_pred, b_pred))
        assert jnp.allclose(loss, ref, atol=tol, rtol=tol), (shape, dtype, loss, ref)

    print("KERNEL_OK")
</pallas_src>

<mosaic_0001>
module attributes {stable_mosaic.version = 11 : i64} {
  func.func @kernel(%arg0: i32, %arg1: i32, %arg2: memref<8x256xf32, #tpu.memory_space<vmem>>, %arg3: memref<8x256xf32, #tpu.memory_space<vmem>>, %arg4: memref<1x8x128xf32, #tpu.memory_space<vmem>>, %arg5: memref<1x8x128xf32, #tpu.memory_space<vmem>>, %arg6: memref<1x8x128xf32, #tpu.memory_space<vmem>>) attributes {dimension_semantics = [#tpu.dimension_semantics<parallel>, #tpu.dimension_semantics<arbitrary>], iteration_bounds = array<i64: 1, 1>, scalar_prefetch = 0 : i64, scratch_operands = 0 : i64, tpu.core_type = #tpu.core_type<tc>, window_params = [{transform_indices = @transform_0, window_bounds = array<i64: 8, 256>}, {transform_indices = @transform_1, window_bounds = array<i64: 8, 256>}, {transform_indices = @transform_2, window_bounds = array<i64: 1, 8, 128>}, {transform_indices = @transform_3, window_bounds = array<i64: 1, 8, 128>}, {transform_indices = @transform_4, window_bounds = array<i64: 1, 8, 128>}]} {
    %c0_i32 = arith.constant 0 : i32
    %0 = arith.cmpi eq, %arg1, %c0_i32 : i32
    %1 = arith.extui %0 : i1 to i32
    %c0_i32_0 = arith.constant 0 : i32
    %2 = arith.cmpi ne, %1, %c0_i32_0 : i32
    scf.if %2 {
      %cst_21 = arith.constant 0.000000e+00 : f32
      %42 = vector.broadcast %cst_21 : f32 to vector<1x8x128xf32>
      %c0_22 = arith.constant 0 : index
      %c0_23 = arith.constant 0 : index
      %c0_24 = arith.constant 0 : index
      %43 = vector.load %arg4[%c0_22, %c0_23, %c0_24] : memref<1x8x128xf32, #tpu.memory_space<vmem>>, vector<1x8x128xf32>
      tpu.vector_store %arg4[%c0_22, %c0_23, %c0_24], %42 {strides = array<i32>} : memref<1x8x128xf32, #tpu.memory_space<vmem>>, vector<1x8x128xf32>,
      %cst_25 = arith.constant 0.000000e+00 : f32
      %44 = vector.broadcast %cst_25 : f32 to vector<1x8x128xf32>
      %c0_26 = arith.constant 0 : index
      %c0_27 = arith.constant 0 : index
      %c0_28 = arith.constant 0 : index
      %45 = vector.load %arg5[%c0_26, %c0_27, %c0_28] : memref<1x8x128xf32, #tpu.memory_space<vmem>>, vector<1x8x128xf32>
      tpu.vector_store %arg5[%c0_26, %c0_27, %c0_28], %44 {strides = array<i32>} : memref<1x8x128xf32, #tpu.memory_space<vmem>>, vector<1x8x128xf32>,
      %cst_29 = arith.constant 0.000000e+00 : f32
      %46 = vector.broadcast %cst_29 : f32 to vector<1x8x128xf32>
      %c0_30 = arith.constant 0 : index
      %c0_31 = arith.constant 0 : index
      %c0_32 = arith.constant 0 : index
      %47 = vector.load %arg6[%c0_30, %c0_31, %c0_32] : memref<1x8x128xf32, #tpu.memory_space<vmem>>, vector<1x8x128xf32>
      tpu.vector_store %arg6[%c0_30, %c0_31, %c0_32], %46 {strides = array<i32>} : memref<1x8x128xf32, #tpu.memory_space<vmem>>, vector<1x8x128xf32>,
    } else {
    }
    %cst = arith.constant 0.000000e+00 : f32
    %3 = vector.broadcast %cst : f32 to vector<8x128xf32>
    %c0_i32_1 = arith.constant 0 : i32
    %c256_i32 = arith.constant 256 : i32
    %4 = arith.muli %c0_i32_1, %c256_i32 : i32
    %5 = tpu.assume_multiple %4, 256 : i32
    %c0 = arith.constant 0 : index
    %6 = arith.index_cast %5 : i32 to index
    %7 = vector.load %arg2[%c0, %6] : memref<8x256xf32, #tpu.memory_space<vmem>>, vector<8x256xf32>
    %c0_2 = arith.constant 0 : index
    %8 = arith.index_cast %5 : i32 to index
    %9 = vector.load %arg3[%c0_2, %8] : memref<8x256xf32, #tpu.memory_space<vmem>>, vector<8x256xf32>
    %10 = arith.mulf %7, %9 : vector<8x256xf32>
    %11 = arith.mulf %7, %10 : vector<8x256xf32>
    %12 = vector.extract_strided_slice %9 {offsets = [0, 0], sizes = [8, 128], strides = [1, 1]} : vector<8x256xf32> to vector<8x128xf32>
    %13 = vector.extract_strided_slice %10 {offsets = [0, 0], sizes = [8, 128], strides = [1, 1]} : vector<8x256xf32> to vector<8x128xf32>
    %14 = vector.extract_strided_slice %11 {offsets = [0, 0], sizes = [8, 128], strides = [1, 1]} : vector<8x256xf32> to vector<8x128xf32>
    %15 = vector.extract_strided_slice %9 {offsets = [0, 128], sizes = [8, 128], strides = [1, 1]} : vector<8x256xf32> to vector<8x128xf32>
    %16 = arith.addf %12, %15 : vector<8x128xf32>
    %17 = vector.extract_strided_slice %10 {offsets = [0, 128], sizes = [8, 128], strides = [1, 1]} : vector<8x256xf32> to vector<8x128xf32>
    %18 = arith.addf %13, %17 : vector<8x128xf32>
    %19 = vector.extract_strided_slice %11 {offsets = [0, 128], sizes = [8, 128], strides = [1, 1]} : vector<8x256xf32> to vector<8x128xf32>
    %20 = arith.addf %14, %19 : vector<8x128xf32>
    %21 = arith.addf %3, %16 : vector<8x128xf32>
    %22 = arith.addf %3, %18 : vector<8x128xf32>
    %23 = arith.addf %3, %20 : vector<8x128xf32>
    %c1_i32 = arith.constant 1 : i32
    %c0_3 = arith.constant 0 : index
    %c0_4 = arith.constant 0 : index
    %c0_5 = arith.constant 0 : index
    %24 = vector.load %arg4[%c0_3, %c0_4, %c0_5] : memref<1x8x128xf32, #tpu.memory_space<vmem>>, vector<1x8x128xf32>
    %25 = vector.shape_cast %24 : vector<1x8x128xf32> to vector<8x128xf32>
    %26 = arith.addf %25, %21 : vector<8x128xf32>
    %c0_6 = arith.constant 0 : index
    %c0_7 = arith.constant 0 : index
    %c0_8 = arith.constant 0 : index
    %27 = vector.load %arg4[%c0_6, %c0_7, %c0_8] : memref<1x8x128xf32, #tpu.memory_space<vmem>>, vector<1x8x128xf32>
    %28 = vector.shape_cast %27 : vector<1x8x128xf32> to vector<8x128xf32>
    %29 = vector.shape_cast %26 : vector<8x128xf32> to vector<1x8x128xf32>
    tpu.vector_store %arg4[%c0_6, %c0_7, %c0_8], %29 {strides = array<i32>} : memref<1x8x128xf32, #tpu.memory_space<vmem>>, vector<1x8x128xf32>,
    %c0_9 = arith.constant 0 : index
    %c0_10 = arith.constant 0 : index
    %c0_11 = arith.constant 0 : index
    %30 = vector.load %arg5[%c0_9, %c0_10, %c0_11] : memref<1x8x128xf32, #tpu.memory_space<vmem>>, vector<1x8x128xf32>
    %31 = vector.shape_cast %30 : vector<1x8x128xf32> to vector<8x128xf32>
    %32 = arith.addf %31, %22 : vector<8x128xf32>
    %c0_12 = arith.constant 0 : index
    %c0_13 = arith.constant 0 : index
    %c0_14 = arith.constant 0 : index
    %33 = vector.load %arg5[%c0_12, %c0_13, %c0_14] : memref<1x8x128xf32, #tpu.memory_space<vmem>>, vector<1x8x128xf32>
    %34 = vector.shape_cast %33 : vector<1x8x128xf32> to vector<8x128xf32>
    %35 = vector.shape_cast %32 : vector<8x128xf32> to vector<1x8x128xf32>
    tpu.vector_store %arg5[%c0_12, %c0_13, %c0_14], %35 {strides = array<i32>} : memref<1x8x128xf32, #tpu.memory_space<vmem>>, vector<1x8x128xf32>,
    %c0_15 = arith.constant 0 : index
    %c0_16 = arith.constant 0 : index
    %c0_17 = arith.constant 0 : index
    %36 = vector.load %arg6[%c0_15, %c0_16, %c0_17] : memref<1x8x128xf32, #tpu.memory_space<vmem>>, vector<1x8x128xf32>
    %37 = vector.shape_cast %36 : vector<1x8x128xf32> to vector<8x128xf32>
    %38 = arith.addf %37, %23 : vector<8x128xf32>
    %c0_18 = arith.constant 0 : index
    %c0_19 = arith.constant 0 : index
    %c0_20 = arith.constant 0 : index
    %39 = vector.load %arg6[%c0_18, %c0_19, %c0_20] : memref<1x8x128xf32, #tpu.memory_space<vmem>>, vector<1x8x128xf32>
    %40 = vector.shape_cast %39 : vector<1x8x128xf32> to vector<8x128xf32>
    %41 = vector.shape_cast %38 : vector<8x128xf32> to vector<1x8x128xf32>
    tpu.vector_store %arg6[%c0_18, %c0_19, %c0_20], %41 {strides = array<i32>} : memref<1x8x128xf32, #tpu.memory_space<vmem>>, vector<1x8x128xf32>,
    return
  }
  func.func @transform_0(%arg0: i32, %arg1: i32) -> (i32, i32) {
    %c1_i32 = arith.constant 1 : i32
    %0 = arith.muli %arg0, %c1_i32 : i32
    %1 = arith.addi %0, %arg1 : i32
    %c0_i32 = arith.constant 0 : i32
    %c0_i32_0 = arith.constant 0 : i32
    return %c0_i32, %1 : i32, i32
  }
  func.func @transform_1(%arg0: i32, %arg1: i32) -> (i32, i32) {
    %c1_i32 = arith.constant 1 : i32
    %0 = arith.muli %arg0, %c1_i32 : i32
    %1 = arith.addi %0, %arg1 : i32
    %c0_i32 = arith.constant 0 : i32
    %c0_i32_0 = arith.constant 0 : i32
    return %c0_i32, %1 : i32, i32
  }
  func.func @transform_2(%arg0: i32, %arg1: i32) -> (i32, i32, i32) {
    %c0_i32 = arith.constant 0 : i32
    %c0_i32_0 = arith.constant 0 : i32
    %c0_i32_1 = arith.constant 0 : i32
    return %arg0, %c0_i32, %c0_i32_0 : i32, i32, i32
  }
  func.func @transform_3(%arg0: i32, %arg1: i32) -> (i32, i32, i32) {
    %c0_i32 = arith.constant 0 : i32
    %c0_i32_0 = arith.constant 0 : i32
    %c0_i32_1 = arith.constant 0 : i32
    return %arg0, %c0_i32, %c0_i32_0 : i32, i32, i32
  }
  func.func @transform_4(%arg0: i32, %arg1: i32) -> (i32, i32, i32) {
    %c0_i32 = arith.constant 0 : i32
    %c0_i32_0 = arith.constant 0 : i32
    %c0_i32_1 = arith.constant 0 : i32
    return %arg0, %c0_i32, %c0_i32_0 : i32, i32, i32
  }
}

</mosaic_0001>

<llo_original>
// kernel: dive_loss.1
$region0: #{dive_loss.1}
  #allocation0 [shape = 'u32[]', space=smem, size = 0x4, offset = 0x4, fixed_abs, tag = 'smem constant byte address 0x4 - core index']
  #allocation1 [shape = 'u32[144,128]{1,0:T(1,128)}', space=vmem, size = 0x12000, scoped, tag = 'internal scratch']
  %s0 = inlined_call_operand.vmem [shape: f32[8,256], index: 0, kind: input, shape index: {}]
  %s1 = inlined_call_operand.vmem [shape: f32[8,256], index: 1, kind: input, shape index: {}]
  %s2 = inlined_call_operand.vmem [shape: f32[1,8,128], index: 2, kind: output, shape index: {0}]
  %s3 = inlined_call_operand.vmem [shape: f32[1,8,128], index: 3, kind: output, shape index: {1}]
  %s4 = inlined_call_operand.vmem [shape: f32[1,8,128], index: 4, kind: output, shape index: {2}]
  %5 = xla_tuple %s2, %s3, %s4
  %s6 = sld [smem:[#allocation0]]
  $region38: #{dive_loss.1} parent=0
    _
  %s8 = ssub.s32 1, %s6
  %s9 = scalar_select 0, %s8, %s6
  // Predicated region
  $region2: #{dive_loss.1} parent=0 // pred_check
    _
  $region3: #{dive_loss.1} parent=0 // pred_check_branch
    %11 = sbr.rel (0) target = $region5
  $region4: #{dive_loss.1} parent=0 // pred_region
    %s12 = sadd.s32 0, 0
    %s13 = smul.u32 2, %s12
    %p14 = scmp.lt.s32.totalorder %s13, 1
    %s15 = scalar_select %p14, %s13, 1
    %s16 = smul.addr %s15, 8
    %s17 = scalar_lea.vmem %s0, %s16
    %s18 = sadd.s32 0, 0
    %s19 = smul.u32 2, %s18
  $region5: #{dive_loss.1} parent=0 // pred_fallthru
    _
  // Predicated region
  $region6: #{dive_loss.1} parent=0 // pred_check
    _
  $region7: #{dive_loss.1} parent=0 // pred_check_branch
    %21 = sbr.rel (0) target = $region9
  $region8: #{dive_loss.1} parent=0 // pred_region
    %s22 = sadd.s32 0, 0
    %s23 = smul.u32 2, %s22
    %p24 = scmp.lt.s32.totalorder %s23, 1
    %s25 = scalar_select %p24, %s23, 1
    %s26 = smul.addr %s25, 8
    %s27 = scalar_lea.vmem %s1, %s26
    %s28 = sadd.s32 0, 0
    %s29 = smul.u32 2, %s28
  $region9: #{dive_loss.1} parent=0 // pred_fallthru
    _
  %s30 = sadd.s32 0, 0
  %s31 = smul.u32 2, %s30
  %p32 = scmp.lt.s32.totalorder %s31, 1
  %s33 = scalar_select %p32, %s31, 1
  %s34 = smul.addr %s33, 8
  %s35 = scalar_lea.vmem %s0, %s34
  %s36 = sadd.s32 0, 0
  %s37 = smul.u32 2, %s36
  %p38 = scmp.lt.s32.totalorder %s37, 1
  %s39 = scalar_select %p38, %s37, 1
  %s40 = smul.addr %s39, 8
  %s41 = scalar_lea.vmem %s1, %s40
  %s42 = sadd.s32 0, 0
  %s43 = smul.u32 2, %s42
  %p44 = scmp.lt.s32.totalorder %s43, 1
  %s45 = scalar_select %p44, %s43, 1
  %s46 = smul.addr %s45, 8
  %s47 = scalar_lea.vmem %s0, %s46
  %s48 = sadd.s32 0, 0
  %s49 = smul.u32 2, %s48
  %s50 = sadd.s32 0, 0
  %s51 = smul.u32 2, %s50
  %p52 = scmp.lt.s32.totalorder %s51, 1
  %s53 = scalar_select %p52, %s51, 1
  %s54 = smul.addr %s53, 8
  %s55 = scalar_lea.vmem %s1, %s54
  %s56 = sadd.s32 0, 0
  %s57 = smul.u32 2, %s56
  %p58 = scmp.eq.s32.totalorder 0, 0
  // Predicated region
  $region10: #{dive_loss.1} parent=0 // pred_check
    %p59 = pneg %p58
  $region11: #{dive_loss.1} parent=0 // pred_check_branch
    %61 = sbr.rel (%p59) target = $region13
  $region12: #{dive_loss.1} parent=0 // pred_region
    %62 = vst [vmem:[%s2] sm:$0xff] 0.0
    %63 = vst [vmem:[%s3] sm:$0xff] 0.0
    %64 = vst [vmem:[%s4] sm:$0xff] 0.0
  $region13: #{dive_loss.1} parent=0 // pred_fallthru
    _
  %v65 = vld [vmem:[%s47] sm:$0xff]
  %v66 = vld [vmem:[%s47 + $0x8] sm:$0xff]
  %v67 = vld [vmem:[%s55] sm:$0xff]
  %v68 = vld [vmem:[%s55 + $0x8] sm:$0xff]
  %v69 = vmul.f32 %v65, %v67
  %v70 = vmul.f32 %v66, %v68
  %v71 = vmul.f32 %v65, %v69
  %v72 = vmul.f32 %v66, %v70
  %v73 = vadd.f32 %v67, %v68
  %v74 = vadd.f32 %v69, %v70
  %v75 = vadd.f32 %v71, %v72
  %v76 = vadd.f32 %v73, 0.0
  %v77 = vadd.f32 %v74, 0.0
  %v78 = vadd.f32 %v75, 0.0
  %v79 = vld [vmem:[%s2] sm:$0xff]
  %v80 = vadd.f32 %v79, %v76
  %81 = vst [vmem:[%s2] sm:$0xff] %v80
  %v82 = vld [vmem:[%s3] sm:$0xff]
  %v83 = vadd.f32 %v82, %v77
  %84 = vst [vmem:[%s3] sm:$0xff] %v83
  %v85 = vld [vmem:[%s4] sm:$0xff]
  %v86 = vadd.f32 %v85, %v78
  %87 = vst [vmem:[%s4] sm:$0xff] %v86
  // Predicated region
  $region14: #{dive_loss.1} parent=0 // pred_check
    _
  $region15: #{dive_loss.1} parent=0 // pred_check_branch
    %89 = sbr.rel (0) target = $region17
  $region16: #{dive_loss.1} parent=0 // pred_region
    _
  $region17: #{dive_loss.1} parent=0 // pred_fallthru
    _
  // Predicated region
  $region18: #{dive_loss.1} parent=0 // pred_check
    _
  $region19: #{dive_loss.1} parent=0 // pred_check_branch
    %91 = sbr.rel (0) target = $region21
  $region20: #{dive_loss.1} parent=0 // pred_region
    _
  $region21: #{dive_loss.1} parent=0 // pred_fallthru
    _
  // Predicated region
  $region22: #{dive_loss.1} parent=0 // pred_check
    _
  $region23: #{dive_loss.1} parent=0 // pred_check_branch
    %93 = sbr.rel (0) target = $region25
  $region24: #{dive_loss.1} parent=0 // pred_region
    _
  $region25: #{dive_loss.1} parent=0 // pred_fallthru
    _
  // Predicated region
  $region26: #{dive_loss.1} parent=0 // pred_check
    _
  $region27: #{dive_loss.1} parent=0 // pred_check_branch
    %95 = sbr.rel (0) target = $region29
  $region28: #{dive_loss.1} parent=0 // pred_region
    _
  $region29: #{dive_loss.1} parent=0 // pred_fallthru
    _
  // Predicated region
  $region30: #{dive_loss.1} parent=0 // pred_check
    _
  $region31: #{dive_loss.1} parent=0 // pred_check_branch
    %97 = sbr.rel (0) target = $region33
  $region32: #{dive_loss.1} parent=0 // pred_region
    _
  $region33: #{dive_loss.1} parent=0 // pred_fallthru
    _
  // Predicated region
  $region34: #{dive_loss.1} parent=0 // pred_check
    _
  $region35: #{dive_loss.1} parent=0 // pred_check_branch
    %99 = sbr.rel (0) target = $region37
  $region36: #{dive_loss.1} parent=0 // pred_region
    _
  $region37: #{dive_loss.1} parent=0 // pred_fallthru
    _

</llo_original>
